<compile_context>
chip_gen: v7x
topology: tpu7x:2x2x1
jax: 0.10.0
libtpu: 0.0.40
codegen_flags: <defaults>
</compile_context>

<pallas_src>
import functools

import jax
import jax.numpy as jnp
import numpy as np
from jax import lax
from jax.experimental import pallas as pl
from jax.experimental.pallas import tpu as pltpu

F_PAD = 128            # lane-dense padded feature width
C_DST = F_PAD - 2      # column of W_aug holding W @ att_dst.T
C_SRC = F_PAD - 1      # column of W_aug holding W @ att_src.T
NEG_SLOPE = 0.2        # PyG GATConv default negative_slope
NEG_BIAS = -1e30       # additive mask bias for non-edges (bf16-representable)
NEG_INIT = -1e30       # finite init for the online-softmax running max (no inf-inf NaNs)


# --------------------------------------------------------------------------- #
# Kernel 1: projection  H_aug = X @ W_aug  ->  H (bf16), a_dst (col), a_src (row)
# --------------------------------------------------------------------------- #
def _project_kernel(x_ref, w_ref, h_ref, adst_ref, asrc_ref):
    haug = jnp.dot(x_ref[...], w_ref[...],
                   preferred_element_type=jnp.float32)              # (tp, 128)
    h_ref[...] = haug.astype(jnp.bfloat16)                          # bf16 RHS for alpha @ H
    adst_ref[...] = haug[:, C_DST:C_DST + 1]                        # (tp, 1)
    # a_src must live on the lane axis for the pairwise broadcast; pull the
    # C_SRC column out as a row with a one-hot MXU contraction.
    sel = (lax.broadcasted_iota(jnp.int32, (8, F_PAD), 1) == C_SRC).astype(jnp.float32)
    asrc = lax.dot_general(sel, haug, (((1,), (1,)), ((), ())),
                           preferred_element_type=jnp.float32)      # (8, tp)
    asrc_ref[...] = asrc[0:1, :]                                    # (1, tp)


def _project(x_pad, w_aug, *, tp=128):
    n_pad = x_pad.shape[0]
    return pl.pallas_call(
        _project_kernel,
        out_shape=(jax.ShapeDtypeStruct((n_pad, F_PAD), jnp.bfloat16),
                   jax.ShapeDtypeStruct((n_pad, 1), jnp.float32),
                   jax.ShapeDtypeStruct((1, n_pad), jnp.float32)),
        grid=(n_pad // tp,),
        in_specs=[
            pl.BlockSpec((tp, F_PAD), lambda i: (i, 0)),      # node features tile
            pl.BlockSpec((F_PAD, F_PAD), lambda i: (0, 0)),   # folded weights (invariant)
        ],
        out_specs=(
            pl.BlockSpec((tp, F_PAD), lambda i: (i, 0)),      # H (bf16)
            pl.BlockSpec((tp, 1), lambda i: (i, 0)),          # a_dst column
            pl.BlockSpec((1, tp), lambda i: (0, i)),          # a_src row
        ),
        compiler_params=pltpu.CompilerParams(dimension_semantics=("parallel",)),
    )(x_pad, w_aug)


# --------------------------------------------------------------------------- #
# Kernel 2: block-sparse masked-softmax aggregation (online softmax over blocks)
# --------------------------------------------------------------------------- #
def _gat_attn_kernel(cnt_ref, blk_ref, adst_ref, asrc_ref, mask_ref, h_ref, b_ref,
                     out_ref, m_sc, l_sc, acc_sc, *, apply_relu):
    i = pl.program_id(0)                 # destination-row tile (parallel)
    j = pl.program_id(1)                 # nonzero adjacency column block (arbitrary)

    @pl.when(j == 0)
    def _init():
        m_sc[...] = jnp.full(m_sc.shape, NEG_INIT, m_sc.dtype)
        l_sc[...] = jnp.zeros(l_sc.shape, l_sc.dtype)
        acc_sc[...] = jnp.zeros(acc_sc.shape, acc_sc.dtype)

    @pl.when(j < cnt_ref[i])
    def _block():
        # Pairwise attention logits for this (row tile, column block) pair.
        logits = adst_ref[...] + asrc_ref[...]                       # (tm, tk)
        logits = jnp.where(logits > 0, logits, NEG_SLOPE * logits)   # leaky_relu(0.2)
        logits = logits + mask_ref[...]          # additive -1e30 bias mask (no select)
        m_new = jnp.maximum(m_sc[...], jnp.max(logits, axis=-1, keepdims=True))
        corr = jnp.exp(m_sc[...] - m_new)
        p = jnp.exp(logits - m_new)              # masked entries underflow to 0
        l_sc[...] = corr * l_sc[...] + jnp.sum(p, axis=-1, keepdims=True)
        acc_sc[...] = corr * acc_sc[...] + jnp.dot(
            p.astype(jnp.bfloat16), h_ref[...],
            preferred_element_type=jnp.float32)                      # (tm, 128) MXU
        m_sc[...] = m_new

    @pl.when(j == pl.num_programs(1) - 1)
    def _finalize():
        # Normalization folded into the cheap (tm, 128) output scale (EUP recip).
        inv = pl.reciprocal(jnp.maximum(l_sc[...], 1e-20), approx=True)
        out = acc_sc[...] * inv + b_ref[...]
        if apply_relu:
            out = jnp.maximum(out, 0.0)
        out_ref[...] = out.astype(out_ref.dtype)


def _attention(a_dst, a_src, mask_bias, h_bf16, b_pad, blk_cnt, blk_ids,
               *, tm, tk, max_blocks, apply_relu, vmem_limit):
    n_pad = h_bf16.shape[0]
    n_row_tiles = n_pad // tm
    kernel = functools.partial(_gat_attn_kernel, apply_relu=apply_relu)
    return pl.pallas_call(
        kernel,
        out_shape=jax.ShapeDtypeStruct((n_pad, F_PAD), jnp.float32),
        grid_spec=pltpu.PrefetchScalarGridSpec(
            num_scalar_prefetch=2,
            grid=(n_row_tiles, max_blocks),
            in_specs=[
                pl.BlockSpec((tm, 1), lambda i, j, cnt, blk: (i, 0)),           # a_dst
                pl.BlockSpec((1, tk), lambda i, j, cnt, blk: (0, blk[i, j])),   # a_src
                pl.BlockSpec((tm, tk), lambda i, j, cnt, blk: (i, blk[i, j])),  # mask bias
                pl.BlockSpec((tk, F_PAD), lambda i, j, cnt, blk: (blk[i, j], 0)),  # H
                pl.BlockSpec((1, F_PAD), lambda i, j, cnt, blk: (0, 0)),        # bias
            ],
            out_specs=pl.BlockSpec((tm, F_PAD), lambda i, j, cnt, blk: (i, 0)),
            scratch_shapes=[
                pltpu.VMEM((tm, 1), jnp.float32),       # running max
                pltpu.VMEM((tm, 1), jnp.float32),       # running denom
                pltpu.VMEM((tm, F_PAD), jnp.float32),   # running aggregate
            ],
        ),
        compiler_params=pltpu.CompilerParams(
            dimension_semantics=("parallel", "arbitrary"),
            vmem_limit_bytes=vmem_limit,
        ),
    )(blk_cnt, blk_ids, a_dst, a_src, mask_bias, h_bf16, b_pad)


# --------------------------------------------------------------------------- #
# Host-side helpers
# --------------------------------------------------------------------------- #
def _vmem_capacity():
    try:
        return int(pltpu.get_tpu_info().vmem_capacity_bytes)
    except Exception:
        return 64 * 1024 * 1024          # conservative (v7x) fallback


def _choose_tiles(n, cap):
    tk = 128                             # column-block granularity (lane width)
    tm = 256 if (cap >= 100 * 1024 * 1024 and n >= 512) else 128
    n_pad = ((n + tm - 1) // tm) * tm
    return tm, tk, n_pad


def _attn_vmem_limit(tm, tk, cap):
    f32, bf16 = 4, 2
    est = (2 * tm * tk * bf16            # streamed mask-bias tiles (double buffered)
           + 2 * tk * F_PAD * bf16       # streamed H column blocks
           + 2 * tm * F_PAD * f32        # a_dst tiles (lane padded)
           + 2 * 8 * tk * f32            # a_src tiles (sublane padded)
           + 2 * 8 * F_PAD * f32         # bias
           + 2 * tm * F_PAD * f32        # output tiles
           + 3 * tm * F_PAD * f32        # m / l / acc scratch
           + 6 * tm * tk * f32)          # logits / exp temporaries
    return int(min(max(4 * est, 32 * 1024 * 1024), int(0.85 * cap)))


def _pad2d(a, rows, cols):
    r, c = a.shape
    return jnp.pad(a.astype(jnp.float32), ((0, rows - r), (0, cols - c)))


def _augment_weight(w, att_src, att_dst):
    """[W | zeros | W @ att_dst.T | W @ att_src.T], zero-padded to (F_PAD, F_PAD)."""
    fin, fout = w.shape
    w_aug = jnp.zeros((F_PAD, F_PAD), jnp.float32)
    w_aug = w_aug.at[:fin, :fout].set(w.astype(jnp.float32))
    w_aug = w_aug.at[:fin, C_DST].set((w @ att_dst.T)[:, 0])
    w_aug = w_aug.at[:fin, C_SRC].set((w @ att_src.T)[:, 0])
    return w_aug


def _build_mask_and_blocks(adj, n, n_pad, tm, tk):
    """Additive bias mask (bf16) plus per-row-tile nonzero column-block lists."""
    # TODO(synk): this densification / block scan is host numpy glue (concrete adj).
    adj_np = np.asarray(jax.device_get(adj)) != 0
    mask_np = np.zeros((n_pad, n_pad), dtype=bool)
    mask_np[:n, :n] = adj_np
    np.fill_diagonal(mask_np, True)      # add_self_loops=True; keeps every row non-empty

    n_rt, n_cb = n_pad // tm, n_pad // tk
    blk_nnz = mask_np.reshape(n_rt, tm, n_cb, tk).any(axis=(1, 3))   # (n_rt, n_cb)
    counts = blk_nnz.sum(axis=1).astype(np.int32)
    max_blocks = int(counts.max())
    blk_ids = np.zeros((n_rt, max_blocks), dtype=np.int32)
    for r in range(n_rt):
        ids = np.flatnonzero(blk_nnz[r]).astype(np.int32)
        blk_ids[r, :ids.size] = ids
        if ids.size < max_blocks:
            blk_ids[r, ids.size:] = ids[-1]   # harmless duplicate fetch; compute skipped

    mask_bias = np.where(mask_np, 0.0, NEG_BIAS).astype(np.float32)
    return (jnp.asarray(mask_bias, dtype=jnp.bfloat16),
            jnp.asarray(counts), jnp.asarray(blk_ids), max_blocks)


def _gat_layer(x_pad, w_aug, b_pad, mask_bias, blk_cnt, blk_ids, max_blocks,
               *, tm, tk, apply_relu, vmem_limit):
    h_bf16, a_dst, a_src = _project(x_pad, w_aug, tp=128)
    return _attention(a_dst, a_src, mask_bias, h_bf16, b_pad, blk_cnt, blk_ids,
                      tm=tm, tk=tk, max_blocks=max_blocks,
                      apply_relu=apply_relu, vmem_limit=vmem_limit)


def gaa_encoder(x, adj, params):
    """GAAEncoder forward.

    x:   (N, in_channels) node features.
    adj: (N, N) dense adjacency, adj[i, j] = 1 iff edge j (source) -> i (target).
    params = (w1, att_src1, att_dst1, b1, w2, att_src2, att_dst2, b2).
    """
    w1, as1, ad1, b1, w2, as2, ad2, b2 = params
    n = x.shape[0]
    in_channels = x.shape[1]
    hidden = w1.shape[1]
    out_channels = w2.shape[1]
    assert in_channels <= F_PAD and hidden <= C_DST and out_channels <= C_DST

    cap = _vmem_capacity()
    tm, tk, n_pad = _choose_tiles(n, cap)
    vmem_limit = _attn_vmem_limit(tm, tk, cap)

    mask_bias, blk_cnt, blk_ids, max_blocks = _build_mask_and_blocks(
        adj, n, n_pad, tm, tk)

    x_pad = _pad2d(x, n_pad, F_PAD)
    w1_aug = _augment_weight(w1, as1, ad1)
    w2_aug = _augment_weight(w2, as2, ad2)
    b1_pad = _pad2d(b1, 1, F_PAD)
    b2_pad = _pad2d(b2, 1, F_PAD)

    h1 = _gat_layer(x_pad, w1_aug, b1_pad, mask_bias, blk_cnt, blk_ids, max_blocks,
                    tm=tm, tk=tk, apply_relu=True, vmem_limit=vmem_limit)
    h2 = _gat_layer(h1, w2_aug, b2_pad, mask_bias, blk_cnt, blk_ids, max_blocks,
                    tm=tm, tk=tk, apply_relu=False, vmem_limit=vmem_limit)
    return h2[:n, :out_channels]


# --------------------------------------------------------------------------- #
# Plain-JAX reference (for the correctness check)
# --------------------------------------------------------------------------- #
def _gat_layer_ref(h, adj, w, att_src, att_dst, b):
    H = h @ w
    logits = (H @ att_dst.T) + (att_src @ H.T)        # [i, j] = a_dst[i] + a_src[j]
    logits = jnp.where(logits > 0, logits, NEG_SLOPE * logits)
    logits = jnp.where(adj > 0, logits, -jnp.inf)
    alpha = jax.nn.softmax(logits, axis=-1)
    return alpha @ H + b


def gaa_encoder_ref(x, adj, params):
    w1, as1, ad1, b1, w2, as2, ad2, b2 = params
    n = x.shape[0]
    adj = adj.at[jnp.arange(n), jnp.arange(n)].set(1.0)   # add_self_loops=True
    h1 = jnp.maximum(_gat_layer_ref(x, adj, w1, as1, ad1, b1), 0.0)
    return _gat_layer_ref(h1, adj, w2, as2, ad2, b2)


# --------------------------------------------------------------------------- #
if __name__ == "__main__":
    N = 20                       # graph nodes (padded to 128 inside the wrapper)
    in_channels = 8
    out_channels = 8
    hidden = 2 * out_channels    # conv1: in -> 2*out, conv2: 2*out -> out

    key = jax.random.PRNGKey(0)
    keys = jax.random.split(key, 8)

    x = jax.random.normal(keys[0], (N, in_channels), dtype=jnp.float32)

    # deterministic edge_index (row 0 = source, row 1 = target): ring + chords
    src = np.concatenate([np.arange(N), np.arange(N)])
    dst = np.concatenate([(np.arange(N) + 1) % N, (np.arange(N) + 3) % N])
    adj = jnp.zeros((N, N), dtype=jnp.float32)
    adj = adj.at[jnp.asarray(dst), jnp.asarray(src)].set(1.0)   # edge j -> i

    s = 0.2
    w1 = s * jax.random.normal(keys[1], (in_channels, hidden), dtype=jnp.float32)
    as1 = s * jax.random.normal(keys[2], (1, hidden), dtype=jnp.float32)
    ad1 = s * jax.random.normal(keys[3], (1, hidden), dtype=jnp.float32)
    b1 = s * jax.random.normal(keys[4], (1, hidden), dtype=jnp.float32)
    w2 = s * jax.random.normal(keys[5], (hidden, out_channels), dtype=jnp.float32)
    as2 = s * jax.random.normal(keys[6], (1, out_channels), dtype=jnp.float32)
    ad2 = s * jax.random.normal(keys[7], (1, out_channels), dtype=jnp.float32)
    b2 = jnp.zeros((1, out_channels), dtype=jnp.float32)
    params = (w1, as1, ad1, b1, w2, as2, ad2, b2)

    out = jax.block_until_ready(gaa_encoder(x, adj, params))
    ref = jax.block_until_ready(gaa_encoder_ref(x, adj, params))

    assert out.shape == (N, out_channels)
    # Kernel runs the aggregate matmuls in bf16 and uses the approximate EUP
    # reciprocal, so compare at bf16-level tolerance.
    np.testing.assert_allclose(np.asarray(out), np.asarray(ref),
                               rtol=2e-2, atol=2e-2)

    print("KERNEL_OK")
</pallas_src>

<mosaic_0001>
module attributes {stable_mosaic.version = 11 : i64} {
  func.func @_project_kernel(%arg0: i32, %arg1: memref<128x128xf32, #tpu.memory_space<vmem>>, %arg2: memref<128x128xf32, #tpu.memory_space<vmem>>, %arg3: memref<128x128xbf16, #tpu.memory_space<vmem>>, %arg4: memref<128x1xf32, #tpu.memory_space<vmem>>, %arg5: memref<1x128xf32, #tpu.memory_space<vmem>>) attributes {dimension_semantics = [#tpu.dimension_semantics<parallel>], iteration_bounds = array<i64: 1>, scalar_prefetch = 0 : i64, scratch_operands = 0 : i64, tpu.core_type = #tpu.core_type<tc>, window_params = [{transform_indices = @transform_0, window_bounds = array<i64: 128, 128>}, {pipeline_mode = #tpu.pipeline_mode<synchronous>, transform_indices = @transform_1, window_bounds = array<i64: 128, 128>}, {transform_indices = @transform_2, window_bounds = array<i64: 128, 128>}, {transform_indices = @transform_3, window_bounds = array<i64: 128, 1>}, {transform_indices = @transform_4, window_bounds = array<i64: 1, 128>}]} {
    %c0 = arith.constant 0 : index
    %c0_0 = arith.constant 0 : index
    %0 = vector.load %arg1[%c0, %c0_0] : memref<128x128xf32, #tpu.memory_space<vmem>>, vector<128x128xf32>
    %c0_1 = arith.constant 0 : index
    %c0_2 = arith.constant 0 : index
    %1 = vector.load %arg2[%c0_1, %c0_2] : memref<128x128xf32, #tpu.memory_space<vmem>>, vector<128x128xf32>
    %cst = arith.constant dense<0.000000e+00> : vector<128x128xf32>
    %2 = tpu.matmul %0, %1, %cst {dimension_numbers = #tpu.dot_dimension_numbers<[1], [0], [0], [1], [0, 0, 1, 1], [], []>} : vector<128x128xf32>, vector<128x128xf32>, vector<128x128xf32> -> vector<128x128xf32>
    %3 = arith.truncf %2 : vector<128x128xf32> to vector<128x128xbf16>
    %c0_3 = arith.constant 0 : index
    %c0_4 = arith.constant 0 : index
    %4 = vector.load %arg3[%c0_3, %c0_4] : memref<128x128xbf16, #tpu.memory_space<vmem>>, vector<128x128xbf16>
    tpu.vector_store %arg3[%c0_3, %c0_4], %3 {strides = array<i32>} : memref<128x128xbf16, #tpu.memory_space<vmem>>, vector<128x128xbf16>,
    %5 = vector.extract_strided_slice %2 {offsets = [0, 126], sizes = [128, 1], strides = [1, 1]} : vector<128x128xf32> to vector<128x1xf32>
    %c0_5 = arith.constant 0 : index
    %c0_6 = arith.constant 0 : index
    %6 = vector.load %arg4[%c0_5, %c0_6] : memref<128x1xf32, #tpu.memory_space<vmem>>, vector<128x1xf32>
    tpu.vector_store %arg4[%c0_5, %c0_6], %5 {strides = array<i32>} : memref<128x1xf32, #tpu.memory_space<vmem>>, vector<128x1xf32>,
    %7 = tpu.iota {dimensions = array<i32: 1>} : vector<8x128xi32>
    %c127_i32 = arith.constant 127 : i32
    %8 = vector.broadcast %c127_i32 : i32 to vector<8x128xi32>
    %9 = arith.cmpi eq, %7, %8 : vector<8x128xi32>
    %10 = arith.extui %9 : vector<8x128xi1> to vector<8x128xi32>
    %11 = arith.sitofp %10 : vector<8x128xi32> to vector<8x128xf32>
    %cst_7 = arith.constant dense<0.000000e+00> : vector<8x128xf32>
    %12 = tpu.matmul %11, %2, %cst_7 {dimension_numbers = #tpu.dot_dimension_numbers<[1], [1], [0], [0], [0, 0, 1, 0], [], []>} : vector<8x128xf32>, vector<128x128xf32>, vector<8x128xf32> -> vector<8x128xf32>
    %13 = vector.extract_strided_slice %12 {offsets = [0, 0], sizes = [1, 128], strides = [1, 1]} : vector<8x128xf32> to vector<1x128xf32>
    %c0_8 = arith.constant 0 : index
    %c0_9 = arith.constant 0 : index
    %14 = vector.load %arg5[%c0_8, %c0_9] : memref<1x128xf32, #tpu.memory_space<vmem>>, vector<1x128xf32>
    tpu.vector_store %arg5[%c0_8, %c0_9], %13 {strides = array<i32>} : memref<1x128xf32, #tpu.memory_space<vmem>>, vector<1x128xf32>,
    return
  }
  func.func @transform_0(%arg0: i32) -> (i32, i32) {
    %c0_i32 = arith.constant 0 : i32
    %c0_i32_0 = arith.constant 0 : i32
    return %arg0, %c0_i32 : i32, i32
  }
  func.func @transform_1(%arg0: i32) -> (i32, i32) {
    %c0_i32 = arith.constant 0 : i32
    %c0_i32_0 = arith.constant 0 : i32
    %c0_i32_1 = arith.constant 0 : i32
    return %c0_i32, %c0_i32_0 : i32, i32
  }
  func.func @transform_2(%arg0: i32) -> (i32, i32) {
    %c0_i32 = arith.constant 0 : i32
    %c0_i32_0 = arith.constant 0 : i32
    return %arg0, %c0_i32 : i32, i32
  }
  func.func @transform_3(%arg0: i32) -> (i32, i32) {
    %c0_i32 = arith.constant 0 : i32
    %c0_i32_0 = arith.constant 0 : i32
    return %arg0, %c0_i32 : i32, i32
  }
  func.func @transform_4(%arg0: i32) -> (i32, i32) {
    %c0_i32 = arith.constant 0 : i32
    %c0_i32_0 = arith.constant 0 : i32
    return %c0_i32, %arg0 : i32, i32
  }
}

</mosaic_0001>

<llo_original>
// kernel: tpu_custom_call.1
$region0: #{tpu_custom_call.1}
  #allocation0 [shape = 'u32[]', space=smem, size = 0x4, offset = 0x4, fixed_abs, tag = 'smem constant byte address 0x4 - core index']
  #allocation1 [shape = 'u32[144,128]{1,0:T(1,128)}', space=vmem, size = 0x12000, scoped, tag = 'internal scratch']
  %s0 = inlined_call_operand.hbm [shape: f32[128,128], index: 0, kind: input, shape index: {}]
  %s1 = inlined_call_operand.hbm [shape: f32[128,128], index: 1, kind: input, shape index: {}]
  %s2 = inlined_call_operand.hbm [shape: bf16[128,128], index: 2, kind: output, shape index: {0}]
  %s3 = inlined_call_operand.vmem [shape: f32[128,1], index: 3, kind: output, shape index: {1}]
  %s4 = inlined_call_operand.hbm [shape: f32[1,128], index: 4, kind: output, shape index: {2}]
  %5 = xla_tuple %s2, %s3, %s4
  %s6 = sld [smem:[#allocation0]]
  $region42: #{tpu_custom_call.1} parent=0
    _
  %s8 = ssub.s32 1, %s6
  %s9 = scalar_select 0, %s8, %s6
  $region1: #{tpu_custom_call.1} parent=0
    #allocation2 [shape = 'u8[65536]{0}', space=vmem, size = 0x10000, scoped, tag = 'input window, operand 0, single buffered']
    #allocation3 [shape = 's32[1]{0}', space=sflag, size = 0x4, scoped, tag = 'scoped memory for tpu_custom_call.1']
    #allocation4 [shape = 's32[1]{0}', space=sflag, size = 0x4, scoped, tag = 'scoped memory for tpu_custom_call.1']
    #allocation5 [shape = 'u8[65536]{0}', space=vmem, size = 0x10000, scoped, tag = 'input window, operand 1, single buffered']
    #allocation6 [shape = 's32[1]{0}', space=sflag, size = 0x4, scoped, tag = 'scoped memory for tpu_custom_call.1']
    #allocation7 [shape = 'u8[32768]{0}', space=vmem, size = 0x8000, scoped, tag = 'output window, operand 0, single buffered']
    #allocation8 [shape = 'u8[512]{0}', space=vmem, size = 0x400, scoped, tag = 'output window, operand 2, single buffered']
    #allocation9 [shape = 's32[1]{0}', space=sflag, size = 0x4, scoped, tag = 'scoped memory for tpu_custom_call.1']
    %10 = vsyncpa [#allocation3], 0
    %11 = vsyncpa [#allocation6], 0
    %12 = vsyncpa [#allocation4], 0
    %13 = vsyncpa [#allocation9], 0
    // Predicated region
    $region2: #{tpu_custom_call.1} parent=1 // pred_check
      _
    $region3: #{tpu_custom_call.1} parent=1 // pred_check_branch
      %15 = sbr.rel (0) target = $region5
    $region4: #{tpu_custom_call.1} parent=1 // pred_region
      %s17 = ssub.s32 2048, 2048
      %18 = vsyncadd [#allocation3], %s17
      %s19 = sshll.u32 [#allocation2], 4
      %s20 = int_to_ptr.vmem [resolvable:$true] %s19
      %25 = dma.hbm_to_vmem [thread:$0]  %s0, 2048, %s20, [#allocation3], 128, 128, 8
    $region5: #{tpu_custom_call.1} parent=1 // pred_fallthru
      _
    // Predicated region
    $region6: #{tpu_custom_call.1} parent=1 // pred_check
      _
    $region7: #{tpu_custom_call.1} parent=1 // pred_check_branch
      %27 = sbr.rel (0) target = $region9
    $region8: #{tpu_custom_call.1} parent=1 // pred_region
      %s29 = ssub.s32 2048, 2048
      %30 = vsyncadd [#allocation6], %s29
      %s31 = sshll.u32 [#allocation5], 4
      %s32 = int_to_ptr.vmem [resolvable:$true] %s31
      %37 = dma.hbm_to_vmem [thread:$0]  %s1, 2048, %s32, [#allocation6], 128, 128, 8
    $region9: #{tpu_custom_call.1} parent=1 // pred_fallthru
      _
    // Predicated region
    $region10: #{tpu_custom_call.1} parent=1 // pred_check
      _
    $region11: #{tpu_custom_call.1} parent=1 // pred_check_branch
      %39 = sbr.rel (0) target = $region13
    $region12: #{tpu_custom_call.1} parent=1 // pred_region
      %40 = dma.done [#allocation3], 2048
    $region13: #{tpu_custom_call.1} parent=1 // pred_fallthru
      _
    // Predicated region
    $region14: #{tpu_custom_call.1} parent=1 // pred_check
      _
    $region15: #{tpu_custom_call.1} parent=1 // pred_check_branch
      %42 = sbr.rel (0) target = $region17
    $region16: #{tpu_custom_call.1} parent=1 // pred_region
      %43 = dma.done [#allocation6], 2048
    $region17: #{tpu_custom_call.1} parent=1 // pred_fallthru
      _
    %v44 = vld [vmem:[#allocation2] sm:$0xff]
    %v45 = vld [vmem:[#allocation2 + $0x8] sm:$0xff]
    %v46 = vld [vmem:[#allocation2 + $0x10] sm:$0xff]
    %v47 = vld [vmem:[#allocation2 + $0x18] sm:$0xff]
    %v48 = vld [vmem:[#allocation2 + $0x20] sm:$0xff]
    %v49 = vld [vmem:[#allocation2 + $0x28] sm:$0xff]
    %v50 = vld [vmem:[#allocation2 + $0x30] sm:$0xff]
    %v51 = vld [vmem:[#allocation2 + $0x38] sm:$0xff]
    %v52 = vld [vmem:[#allocation2 + $0x40] sm:$0xff]
    %v53 = vld [vmem:[#allocation2 + $0x48] sm:$0xff]
    %v54 = vld [vmem:[#allocation2 + $0x50] sm:$0xff]
    %v55 = vld [vmem:[#allocation2 + $0x58] sm:$0xff]
    %v56 = vld [vmem:[#allocation2 + $0x60] sm:$0xff]
    %v57 = vld [vmem:[#allocation2 + $0x68] sm:$0xff]
    %v58 = vld [vmem:[#allocation2 + $0x70] sm:$0xff]
    %v59 = vld [vmem:[#allocation2 + $0x78] sm:$0xff]
    %v60 = vld [vmem:[#allocation5] sm:$0xff]
    %v61 = vld [vmem:[#allocation5 + $0x8] sm:$0xff]
    %v62 = vld [vmem:[#allocation5 + $0x10] sm:$0xff]
    %v63 = vld [vmem:[#allocation5 + $0x18] sm:$0xff]
    %v64 = vld [vmem:[#allocation5 + $0x20] sm:$0xff]
    %v65 = vld [vmem:[#allocation5 + $0x28] sm:$0xff]
    %v66 = vld [vmem:[#allocation5 + $0x30] sm:$0xff]
    %v67 = vld [vmem:[#allocation5 + $0x38] sm:$0xff]
    %v68 = vld [vmem:[#allocation5 + $0x40] sm:$0xff]
    %v69 = vld [vmem:[#allocation5 + $0x48] sm:$0xff]
    %v70 = vld [vmem:[#allocation5 + $0x50] sm:$0xff]
    %v71 = vld [vmem:[#allocation5 + $0x58] sm:$0xff]
    %v72 = vld [vmem:[#allocation5 + $0x60] sm:$0xff]
    %v73 = vld [vmem:[#allocation5 + $0x68] sm:$0xff]
    %v74 = vld [vmem:[#allocation5 + $0x70] sm:$0xff]
    %v75 = vld [vmem:[#allocation5 + $0x78] sm:$0xff]
    %76 = vmatprep.subr.mxu0 0.0
    %77 = vmatpush1.msra.mxu0 %v60
    %78 = vmatprep.subr.mxu0 0.0
    %79 = vmatpush1.msra.mxu0 %v61
    %80 = vmatprep.subr.mxu0 0.0
    %81 = vmatpush1.msra.mxu0 %v62
    %82 = vmatprep.subr.mxu0 0.0
    %83 = vmatpush1.msra.mxu0 %v63
    %84 = vmatprep.subr.mxu0 0.0
    %85 = vmatpush1.msra.mxu0 %v64
    %86 = vmatprep.subr.mxu0 0.0
    %87 = vmatpush1.msra.mxu0 %v65
    %88 = vmatprep.subr.mxu0 0.0
    %89 = vmatpush1.msra.mxu0 %v66
    %90 = vmatprep.subr.mxu0 0.0
    %91 = vmatpush1.msra.mxu0 %v67
    %92 = vmatprep.subr.mxu0 0.0
    %93 = vmatpush1.msra.mxu0 %v68
    %94 = vmatprep.subr.mxu0 0.0
    %95 = vmatpush1.msra.mxu0 %v69
    %96 = vmatprep.subr.mxu0 0.0
    %97 = vmatpush1.msra.mxu0 %v70
    %98 = vmatprep.subr.mxu0 0.0
    %99 = vmatpush1.msra.mxu0 %v71
    %100 = vmatprep.subr.mxu0 0.0
    %101 = vmatpush1.msra.mxu0 %v72
    %102 = vmatprep.subr.mxu0 0.0
    %103 = vmatpush1.msra.mxu0 %v73
    %104 = vmatprep.subr.mxu0 0.0
    %105 = vmatpush1.msra.mxu0 %v74
    %106 = vmatprep.subr.mxu0 0.0
    %107 = vmatpush1.msra.mxu0 %v75
    %108 = vmatprep.subr.mxu0 0.0
    %109 = vmatpush1.msra.mxu0 0.0
    %110 = vmatprep.subr.mxu0 0.0
    %111 = vmatpush1.msra.mxu0 0.0
    %112 = vmatprep.subr.mxu0 0.0
    %113 = vmatpush1.msra.mxu0 0.0
    %114 = vmatprep.subr.mxu0 0.0
    %115 = vmatpush1.msra.mxu0 0.0
    %116 = vmatprep.subr.mxu0 0.0
    %117 = vmatpush1.msra.mxu0 0.0
    %118 = vmatprep.subr.mxu0 0.0
    %119 = vmatpush1.msra.mxu0 0.0
    %120 = vmatprep.subr.mxu0 0.0
    %121 = vmatpush1.msra.mxu0 0.0
    %122 = vmatprep.subr.mxu0 0.0
    %123 = vmatpush1.msra.mxu0 0.0
    %124 = vmatprep.subr.mxu0 0.0
    %125 = vmatpush1.msra.mxu0 0.0
    %126 = vmatprep.subr.mxu0 0.0
    %127 = vmatpush1.msra.mxu0 0.0
    %128 = vmatprep.subr.mxu0 0.0
    %129 = vmatpush1.msra.mxu0 0.0
    %130 = vmatprep.subr.mxu0 0.0
    %131 = vmatpush1.msra.mxu0 0.0
    %132 = vmatprep.subr.mxu0 0.0
    %133 = vmatpush1.msra.mxu0 0.0
    %134 = vmatprep.subr.mxu0 0.0
    %135 = vmatpush1.msra.mxu0 0.0
    %136 = vmatprep.subr.mxu0 0.0
    %137 = vmatpush1.msra.mxu0 0.0
    %138 = vmatprep.subr.mxu0 0.0
    %139 = vmatpush1.msra.mxu0 0.0
    %140 = vmatprep.mubr.f32.mxu0 0.0
    %141 = vmatmul.mubr.f32.gmra.mrb[0].mxu0 %v44
    %v142 = vpop.f32.mrb[0].mxu0
    %v143 = vadd.f32 0.0, %v142
    %v144 = vpop.f32.mrb[0].mxu0
    %145 = vmatprep.mubr.f32.mxu0 0.0
    %146 = vmatmul.mubr.f32.gmra.mrb[0].mxu0 %v45
    %v147 = vpop.f32.mrb[0].mxu0
    %v148 = vadd.f32 0.0, %v147
    %v149 = vpop.f32.mrb[0].mxu0
    %150 = vmatprep.mubr.f32.mxu0 0.0
    %151 = vmatmul.mubr.f32.gmra.mrb[0].mxu0 %v46
    %v152 = vpop.f32.mrb[0].mxu0
    %v153 = vadd.f32 0.0, %v152
    %v154 = vpop.f32.mrb[0].mxu0
    %155 = vmatprep.mubr.f32.mxu0 0.0
    %156 = vmatmul.mubr.f32.gmra.mrb[0].mxu0 %v47
    %v157 = vpop.f32.mrb[0].mxu0
    %v158 = vadd.f32 0.0, %v157
    %v159 = vpop.f32.mrb[0].mxu0
    %160 = vmatprep.mubr.f32.mxu0 0.0
    %161 = vmatmul.mubr.f32.gmra.mrb[0].mxu0 %v48
    %v162 = vpop.f32.mrb[0].mxu0
    %v163 = vadd.f32 0.0, %v162
    %v164 = vpop.f32.mrb[0].mxu0
    %165 = vmatprep.mubr.f32.mxu0 0.0
    %166 = vmatmul.mubr.f32.gmra.mrb[0].mxu0 %v49
    %v167 = vpop.f32.mrb[0].mxu0
    %v168 = vadd.f32 0.0, %v167
    %v169 = vpop.f32.mrb[0].mxu0
    %170 = vmatprep.mubr.f32.mxu0 0.0
    %171 = vmatmul.mubr.f32.gmra.mrb[0].mxu0 %v50
    %v172 = vpop.f32.mrb[0].mxu0
    %v173 = vadd.f32 0.0, %v172
    %v174 = vpop.f32.mrb[0].mxu0
    %175 = vmatprep.mubr.f32.mxu0 0.0
    %176 = vmatmul.mubr.f32.gmra.mrb[0].mxu0 %v51
    %v177 = vpop.f32.mrb[0].mxu0
    %v178 = vadd.f32 0.0, %v177
    %v179 = vpop.f32.mrb[0].mxu0
    %180 = vmatprep.mubr.f32.mxu0 0.0
    %181 = vmatmul.mubr.f32.gmra.mrb[0].mxu0 %v52
    %v182 = vpop.f32.mrb[0].mxu0
    %v183 = vadd.f32 0.0, %v182
    %v184 = vpop.f32.mrb[0].mxu0
    %185 = vmatprep.mubr.f32.mxu0 0.0
    %186 = vmatmul.mubr.f32.gmra.mrb[0].mxu0 %v53
    %v187 = vpop.f32.mrb[0].mxu0
    %v188 = vadd.f32 0.0, %v187
    %v189 = vpop.f32.mrb[0].mxu0
    %190 = vmatprep.mubr.f32.mxu0 0.0
    %191 = vmatmul.mubr.f32.gmra.mrb[0].mxu0 %v54
    %v192 = vpop.f32.mrb[0].mxu0
    %v193 = vadd.f32 0.0, %v192
    %v194 = vpop.f32.mrb[0].mxu0
    %195 = vmatprep.mubr.f32.mxu0 0.0
    %196 = vmatmul.mubr.f32.gmra.mrb[0].mxu0 %v55
    %v197 = vpop.f32.mrb[0].mxu0
    %v198 = vadd.f32 0.0, %v197
    %v199 = vpop.f32.mrb[0].mxu0
    %200 = vmatprep.mubr.f32.mxu0 0.0
    %201 = vmatmul.mubr.f32.gmra.mrb[0].mxu0 %v56
    %v202 = vpop.f32.mrb[0].mxu0
    %v203 = vadd.f32 0.0, %v202
    %v204 = vpop.f32.mrb[0].mxu0
    %205 = vmatprep.mubr.f32.mxu0 0.0
    %206 = vmatmul.mubr.f32.gmra.mrb[0].mxu0 %v57
    %v207 = vpop.f32.mrb[0].mxu0
    %v208 = vadd.f32 0.0, %v207
    %v209 = vpop.f32.mrb[0].mxu0
    %210 = vmatprep.mubr.f32.mxu0 0.0
    %211 = vmatmul.mubr.f32.gmra.mrb[0].mxu0 %v58
    %v212 = vpop.f32.mrb[0].mxu0
    %v213 = vadd.f32 0.0, %v212
    %v214 = vpop.f32.mrb[0].mxu0
    %215 = vmatprep.mubr.f32.mxu0 0.0
    %216 = vmatmul.mubr.f32.gmra.mrb[0].mxu0 %v59
    %v217 = vpop.f32.mrb[0].mxu0
    %v218 = vadd.f32 0.0, %v217
    %v219 = vpop.f32.mrb[0].mxu0
    %220 = vdwg.mxu0
    %v221 = vpack.c.bf16 %v148, %v143
    %v222 = vpack.c.bf16 %v158, %v153
    %v223 = vpack.c.bf16 %v168, %v163
    %v224 = vpack.c.bf16 %v178, %v173
    %v225 = vpack.c.bf16 %v188, %v183
    %v226 = vpack.c.bf16 %v198, %v193
    %v227 = vpack.c.bf16 %v208, %v203
    %v228 = vpack.c.bf16 %v218, %v213
    %v237 = vunpack.c.l.b16 %v221
    %v238 = vunpack.c.h.b16 %v221
    %v239 = vunpack.c.l.b16 %v222
    %v240 = vunpack.c.h.b16 %v222
    %v241 = vunpack.c.l.b16 %v223
    %v242 = vunpack.c.h.b16 %v223
    %v243 = vunpack.c.l.b16 %v224
    %v244 = vunpack.c.h.b16 %v224
    %v245 = vunpack.c.l.b16 %v225
    %v246 = vunpack.c.h.b16 %v225
    %v247 = vunpack.c.l.b16 %v226
    %v248 = vunpack.c.h.b16 %v226
    %v249 = vunpack.c.l.b16 %v227
    %v250 = vunpack.c.h.b16 %v227
    %v251 = vunpack.c.l.b16 %v228
    %v252 = vunpack.c.h.b16 %v228
    %v253 = vpack.c.b16 %v237, %v237
    %v254 = vpack.c.b16 %v238, %v238
    %v255 = vpack.c.b16 %v239, %v239
    %v256 = vpack.c.b16 %v240, %v240
    %v257 = vpack.c.b16 %v241, %v241
    %v258 = vpack.c.b16 %v242, %v242
    %v259 = vpack.c.b16 %v243, %v243
    %v260 = vpack.c.b16 %v244, %v244
    %v261 = vpack.c.b16 %v245, %v245
    %v262 = vpack.c.b16 %v246, %v246
    %v263 = vpack.c.b16 %v247, %v247
    %v264 = vpack.c.b16 %v248, %v248
    %v265 = vpack.c.b16 %v249, %v249
    %v266 = vpack.c.b16 %v250, %v250
    %v267 = vpack.c.b16 %v251, %v251
    %v268 = vpack.c.b16 %v252, %v252
    %285 = vst [vmem:[#allocation7] sm:$0xf] %v253
    %286 = vst [vmem:[#allocation7 + $0x4] sm:$0xf] %v254
    %287 = vst [vmem:[#allocation7 + $0x8] sm:$0xf] %v255
    %288 = vst [vmem:[#allocation7 + $0xc] sm:$0xf] %v256
    %289 = vst [vmem:[#allocation7 + $0x10] sm:$0xf] %v257
    %290 = vst [vmem:[#allocation7 + $0x14] sm:$0xf] %v258
    %291 = vst [vmem:[#allocation7 + $0x18] sm:$0xf] %v259
    %292 = vst [vmem:[#allocation7 + $0x1c] sm:$0xf] %v260
    %293 = vst [vmem:[#allocation7 + $0x20] sm:$0xf] %v261
    %294 = vst [vmem:[#allocation7 + $0x24] sm:$0xf] %v262
    %295 = vst [vmem:[#allocation7 + $0x28] sm:$0xf] %v263
    %296 = vst [vmem:[#allocation7 + $0x2c] sm:$0xf] %v264
    %297 = vst [vmem:[#allocation7 + $0x30] sm:$0xf] %v265
    %298 = vst [vmem:[#allocation7 + $0x34] sm:$0xf] %v266
    %299 = vst [vmem:[#allocation7 + $0x38] sm:$0xf] %v267
    %300 = vst [vmem:[#allocation7 + $0x3c] sm:$0xf] %v268
    %317 = vrot.lane.b32.xlu0 %v143, 2
    %v318 = vpop.permute.xlu0 %317
    %319 = vrot.lane.b32.xlu0 %v148, 2
    %v320 = vpop.permute.xlu0 %319
    %321 = vrot.lane.b32.xlu0 %v153, 2
    %v322 = vpop.permute.xlu0 %321
    %323 = vrot.lane.b32.xlu0 %v158, 2
    %v324 = vpop.permute.xlu0 %323
    %325 = vrot.lane.b32.xlu0 %v163, 2
    %v326 = vpop.permute.xlu0 %325
    %327 = vrot.lane.b32.xlu0 %v168, 2
    %v328 = vpop.permute.xlu0 %327
    %329 = vrot.lane.b32.xlu0 %v173, 2
    %v330 = vpop.permute.xlu0 %329
    %331 = vrot.lane.b32.xlu0 %v178, 2
    %v332 = vpop.permute.xlu0 %331
    %333 = vrot.lane.b32.xlu0 %v183, 2
    %v334 = vpop.permute.xlu0 %333
    %335 = vrot.lane.b32.xlu0 %v188, 2
    %v336 = vpop.permute.xlu0 %335
    %337 = vrot.lane.b32.xlu0 %v193, 2
    %v338 = vpop.permute.xlu0 %337
    %339 = vrot.lane.b32.xlu0 %v198, 2
    %v340 = vpop.permute.xlu0 %339
    %341 = vrot.lane.b32.xlu0 %v203, 2
    %v342 = vpop.permute.xlu0 %341
    %343 = vrot.lane.b32.xlu0 %v208, 2
    %v344 = vpop.permute.xlu0 %343
    %345 = vrot.lane.b32.xlu0 %v213, 2
    %v346 = vpop.permute.xlu0 %345
    %347 = vrot.lane.b32.xlu0 %v218, 2
    %v348 = vpop.permute.xlu0 %347
    %vm365 = vcmask 7168
    %366 = vst.msk [vmem:[%s3] sm:$0xff] %vm365, %v318
    %367 = vst.msk [vmem:[%s3 + $0x8] sm:$0xff] %vm365, %v320
    %368 = vst.msk [vmem:[%s3 + $0x10] sm:$0xff] %vm365, %v322
    %369 = vst.msk [vmem:[%s3 + $0x18] sm:$0xff] %vm365, %v324
    %370 = vst.msk [vmem:[%s3 + $0x20] sm:$0xff] %vm365, %v326
    %371 = vst.msk [vmem:[%s3 + $0x28] sm:$0xff] %vm365, %v328
    %372 = vst.msk [vmem:[%s3 + $0x30] sm:$0xff] %vm365, %v330
    %373 = vst.msk [vmem:[%s3 + $0x38] sm:$0xff] %vm365, %v332
    %374 = vst.msk [vmem:[%s3 + $0x40] sm:$0xff] %vm365, %v334
    %375 = vst.msk [vmem:[%s3 + $0x48] sm:$0xff] %vm365, %v336
    %376 = vst.msk [vmem:[%s3 + $0x50] sm:$0xff] %vm365, %v338
    %377 = vst.msk [vmem:[%s3 + $0x58] sm:$0xff] %vm365, %v340
    %378 = vst.msk [vmem:[%s3 + $0x60] sm:$0xff] %vm365, %v342
    %379 = vst.msk [vmem:[%s3 + $0x68] sm:$0xff] %vm365, %v344
    %380 = vst.msk [vmem:[%s3 + $0x70] sm:$0xff] %vm365, %v346
    %381 = vst.msk [vmem:[%s3 + $0x78] sm:$0xff] %vm365, %v348
    %v382 = vlaneseq
    %v383 = vand.u32 %v382, 127
    %vm384 = vcmp.eq.s32.totalorder %v383, 127
    %v385 = vsel %vm384, 1, 0
    %v386 = vcvt.s32.f32 %v385
    %387 = vmatprep.subr.mxu0 0.0
    %388 = vmatpush1.xpose.msra.mxu0 %v143
    %389 = vmatprep.subr.mxu0 0.0
    %390 = vmatpush1.xpose.msra.mxu0 %v148
    %391 = vmatprep.subr.mxu0 0.0
    %392 = vmatpush1.xpose.msra.mxu0 %v153
    %393 = vmatprep.subr.mxu0 0.0
    %394 = vmatpush1.xpose.msra.mxu0 %v158
    %395 = vmatprep.subr.mxu0 0.0
    %396 = vmatpush1.xpose.msra.mxu0 %v163
    %397 = vmatprep.subr.mxu0 0.0
    %398 = vmatpush1.xpose.msra.mxu0 %v168
    %399 = vmatprep.subr.mxu0 0.0
    %400 = vmatpush1.xpose.msra.mxu0 %v173
    %401 = vmatprep.subr.mxu0 0.0
    %402 = vmatpush1.xpose.msra.mxu0 %v178
    %403 = vmatprep.subr.mxu0 0.0
    %404 = vmatpush1.xpose.msra.mxu0 %v183
    %405 = vmatprep.subr.mxu0 0.0
    %406 = vmatpush1.xpose.msra.mxu0 %v188
    %407 = vmatprep.subr.mxu0 0.0
    %408 = vmatpush1.xpose.msra.mxu0 %v193
    %409 = vmatprep.subr.mxu0 0.0
    %410 = vmatpush1.xpose.msra.mxu0 %v198
    %411 = vmatprep.subr.mxu0 0.0
    %412 = vmatpush1.xpose.msra.mxu0 %v203
    %413 = vmatprep.subr.mxu0 0.0
    %414 = vmatpush1.xpose.msra.mxu0 %v208
    %415 = vmatprep.subr.mxu0 0.0
    %416 = vmatpush1.xpose.msra.mxu0 %v213
    %417 = vmatprep.subr.mxu0 0.0
    %418 = vmatpush1.xpose.msra.mxu0 %v218
    %419 = vmatprep.subr.mxu0 0.0
    %420 = vmatpush1.xpose.msra.mxu0 0.0
    %421 = vmatprep.subr.mxu0 0.0
    %422 = vmatpush1.xpose.msra.mxu0 0.0
    %423 = vmatprep.subr.mxu0 0.0
    %424 = vmatpush1.xpose.msra.mxu0 0.0
    %425 = vmatprep.subr.mxu0 0.0
    %426 = vmatpush1.xpose.msra.mxu0 0.0
    %427 = vmatprep.subr.mxu0 0.0
    %428 = vmatpush1.xpose.msra.mxu0 0.0
    %429 = vmatprep.subr.mxu0 0.0
    %430 = vmatpush1.xpose.msra.mxu0 0.0
    %431 = vmatprep.subr.mxu0 0.0
    %432 = vmatpush1.xpose.msra.mxu0 0.0
    %433 = vmatprep.subr.mxu0 0.0
    %434 = vmatpush1.xpose.msra.mxu0 0.0
    %435 = vmatprep.subr.mxu0 0.0
    %436 = vmatpush1.xpose.msra.mxu0 0.0
    %437 = vmatprep.subr.mxu0 0.0
    %438 = vmatpush1.xpose.msra.mxu0 0.0
    %439 = vmatprep.subr.mxu0 0.0
    %440 = vmatpush1.xpose.msra.mxu0 0.0
    %441 = vmatprep.subr.mxu0 0.0
    %442 = vmatpush1.xpose.msra.mxu0 0.0
    %443 = vmatprep.subr.mxu0 0.0
    %444 = vmatpush1.xpose.msra.mxu0 0.0
    %445 = vmatprep.subr.mxu0 0.0
    %446 = vmatpush1.xpose.msra.mxu0 0.0
    %447 = vmatprep.subr.mxu0 0.0
    %448 = vmatpush1.xpose.msra.mxu0 0.0
    %449 = vmatprep.subr.mxu0 0.0
    %450 = vmatpush1.xpose.msra.mxu0 0.0
    %451 = vmatprep.mubr.f32.mxu0 0.0
    %452 = vmatmul.mubr.f32.gmra.mrb[0].mxu0 %v386
    %v453 = vpop.f32.mrb[0].mxu0
    %v454 = vadd.f32 0.0, %v453
    %v455 = vpop.f32.mrb[0].mxu0
    %456 = vdwg.mxu0
    %457 = vst [vmem:[#allocation8] sm:$0x1] %v454
    // Predicated region
    $region18: #{tpu_custom_call.1} parent=1 // pred_check
      _
    $region19: #{tpu_custom_call.1} parent=1 // pred_check_branch
      %459 = sbr.rel (0) target = $region21
    $region20: #{tpu_custom_call.1} parent=1 // pred_region
      %s461 = ssub.s32 1024, 1024
      %462 = vsyncadd [#allocation4], %s461
      %s463 = sshll.u32 [#allocation7], 4
      %s464 = int_to_ptr.vmem [resolvable:$true] %s463
      %469 = dma.vmem_to_hbm [thread:$0]  %s464, 1024, %s2, [#allocation4], 64, 64, 4
    $region21: #{tpu_custom_call.1} parent=1 // pred_fallthru
      _
    // Predicated region
    $region22: #{tpu_custom_call.1} parent=1 // pred_check
      _
    $region23: #{tpu_custom_call.1} parent=1 // pred_check_branch
      %471 = sbr.rel (0) target = $region25
    $region24: #{tpu_custom_call.1} parent=1 // pred_region
      _
    $region25: #{tpu_custom_call.1} parent=1 // pred_fallthru
      _
    // Predicated region
    $region26: #{tpu_custom_call.1} parent=1 // pred_check
      _
    $region27: #{tpu_custom_call.1} parent=1 // pred_check_branch
      %473 = sbr.rel (0) target = $region29
    $region28: #{tpu_custom_call.1} parent=1 // pred_region
      %s475 = ssub.s32 16, 16
      %476 = vsyncadd [#allocation9], %s475
      %s478 = sshll.u32 [#allocation8], 4
      %s479 = int_to_ptr.vmem [resolvable:$true] %s478
      %481 = dma.vmem_to_hbm [thread:$0]  %s479, 16, %s4, [#allocation9]
    $region29: #{tpu_custom_call.1} parent=1 // pred_fallthru
      _
    // Predicated region
    $region30: #{tpu_custom_call.1} parent=1 // pred_check
      _
    $region31: #{tpu_custom_call.1} parent=1 // pred_check_branch
      %483 = sbr.rel (0) target = $region33
    $region32: #{tpu_custom_call.1} parent=1 // pred_region
      %484 = dma.done [#allocation4], 1024
    $region33: #{tpu_custom_call.1} parent=1 // pred_fallthru
      _
    // Predicated region
    $region34: #{tpu_custom_call.1} parent=1 // pred_check
      _
    $region35: #{tpu_custom_call.1} parent=1 // pred_check_branch
      %486 = sbr.rel (0) target = $region37
    $region36: #{tpu_custom_call.1} parent=1 // pred_region
      _
    $region37: #{tpu_custom_call.1} parent=1 // pred_fallthru
      _
    // Predicated region
    $region38: #{tpu_custom_call.1} parent=1 // pred_check
      _
    $region39: #{tpu_custom_call.1} parent=1 // pred_check_branch
      %488 = sbr.rel (0) target = $region41
    $region40: #{tpu_custom_call.1} parent=1 // pred_region
      %489 = dma.done [#allocation9], 16
    $region41: #{tpu_custom_call.1} parent=1 // pred_fallthru
      _
    %490 = vsyncpa [#allocation3], 1
    %491 = vsyncpa [#allocation6], 1
    %492 = vsyncpa [#allocation4], 1
    %493 = vsyncpa [#allocation9], 1

</llo_original>
